<compile_context>
chip_gen: v7x
topology: tpu7x:2x2x1
jax: 0.10.0
libtpu: 0.0.40
codegen_flags: <defaults>
</compile_context>

<pallas_src>
import jax
import jax.numpy as jnp
from jax import lax
from jax.experimental import pallas as pl
from jax.experimental.pallas import tpu as pltpu

MIN_SNR = 1e-4
MAX_SNR = 1e-2

_LANES = 1024          # lane-dense last dim (multiple of 128)
_SUBLANES = 8          # f32 sublane tile
_MAX_BLOCK_ROWS = 256  # 256 x 1024 x 4B = 1 MiB per f32 block


def _pick_block_rows(rows):
    for cand in (_MAX_BLOCK_ROWS, 128, 64, 32, 16, 8):
        if rows % cand == 0:
            return cand
    return _SUBLANES  # unreachable: rows is always a multiple of 8


# ----------------------- Pass 1: global sum / sum-of-squares -------------------
def _stats_kernel(x_ref, sum_ref, sq_ref):
    @pl.when(pl.program_id(0) == 0)
    def _():
        sum_ref[...] = jnp.zeros_like(sum_ref)
        sq_ref[...] = jnp.zeros_like(sq_ref)

    x = x_ref[...].astype(jnp.float32)                 # (block_rows, LANES)
    x3 = x.reshape(x.shape[0] // _SUBLANES, _SUBLANES, x.shape[1])
    # vreg-shaped accumulation: per-step work stays on the VPU; the expensive
    # cross-lane reduction happens once, after the grid, in the wrapper.
    sum_ref[...] += jnp.sum(x3, axis=0)
    sq_ref[...] += jnp.sum(x3 * x3, axis=0)


# -------------- Pass 2: fused Box-Muller noise generation + add ---------------
def _noise_kernel(nstd_ref, x_ref, bits_ref, o_ref):
    half = x_ref.shape[1] // 2
    nstd = nstd_ref[0, 0]

    # 23 random mantissa bits | exponent(1.0) -> uniform float in [1, 2)
    exp_one = jnp.uint32(0x3F800000)
    f1 = lax.bitcast_convert_type((bits_ref[:, :half] >> 9) | exp_one, jnp.float32)
    f2 = lax.bitcast_convert_type((bits_ref[:, half:] >> 9) | exp_one, jnp.float32)
    u1 = 2.0 - f1                                  # (0, 1]  -> log() stays finite
    u2 = f2 - 1.0                                  # [0, 1)

    r = jnp.sqrt(-2.0 * jnp.log(u1))
    theta = (2.0 * jnp.pi) * u2
    z1 = r * jnp.cos(theta)                        # use BOTH Box-Muller outputs:
    z2 = r * jnp.sin(theta)                        # halves bits + log/sqrt/trig work

    x1 = x_ref[:, :half].astype(jnp.float32)
    x2 = x_ref[:, half:].astype(jnp.float32)
    o_ref[:, :half] = (x1 + nstd * z1).astype(o_ref.dtype)
    o_ref[:, half:] = (x2 + nstd * z2).astype(o_ref.dtype)


def gaussian_noise(audio, *, min_snr=MIN_SNR, max_snr=MAX_SNR, key=None,
                   return_std=False):
    """Pallas implementation of GaussianNoise.forward (audio: any shape, float dtype)."""
    if key is None:
        key = jax.random.PRNGKey(1)
    k_uniform, k_bits = jax.random.split(key)

    orig_shape = audio.shape
    orig_dtype = audio.dtype
    n = audio.size

    # ---- lane-dense re-layout: (rows % 8 == 0, 1024 lanes), zero-padded tail ----
    rows = -(-n // _LANES)
    rows = -(-rows // _SUBLANES) * _SUBLANES
    n_pad = rows * _LANES
    flat = jnp.ravel(audio)
    if n_pad != n:
        flat = jnp.pad(flat, (0, n_pad - n))       # zeros do not perturb sum / sumsq
    x2d = flat.reshape(rows, _LANES)

    block_rows = _pick_block_rows(rows)
    grid = (rows // block_rows,)

    # ---- pass 1: lane-dense partial sums ----
    psum, psq = pl.pallas_call(
        _stats_kernel,
        out_shape=(jax.ShapeDtypeStruct((_SUBLANES, _LANES), jnp.float32),
                   jax.ShapeDtypeStruct((_SUBLANES, _LANES), jnp.float32)),
        grid=grid,
        in_specs=[pl.BlockSpec((block_rows, _LANES), lambda i: (i, 0))],
        out_specs=(pl.BlockSpec((_SUBLANES, _LANES), lambda i: (0, 0)),
                   pl.BlockSpec((_SUBLANES, _LANES), lambda i: (0, 0))),
        compiler_params=pltpu.CompilerParams(
            dimension_semantics=("arbitrary",)),   # resident accumulator
    )(x2d)

    total_sum = jnp.sum(psum)
    total_sq = jnp.sum(psq)
    # torch.std default is unbiased (ddof=1) over all elements.
    # TODO(synk): one-pass sum/sumsq in f32 can cancel for very long, large-mean
    # signals; a Welford/two-pass variant would be more robust.
    mean = total_sum / n
    var = (total_sq - n * mean * mean) / (n - 1)
    std = jnp.sqrt(jnp.maximum(var, 0.0))

    # scalar uniform draw (stands in for python random.uniform)
    u = jax.random.uniform(k_uniform, (), jnp.float32)
    noise_std = (min_snr + u * (max_snr - min_snr)) * std
    nstd = noise_std.astype(jnp.float32).reshape(1, 1)

    # one uint32 of entropy per output element (both Box-Muller outputs are consumed,
    # so no bits are wasted).
    bits = jax.random.bits(k_bits, (rows, _LANES), dtype=jnp.uint32)

    # ---- pass 2: fused noise generation + add ----
    out2d = pl.pallas_call(
        _noise_kernel,
        out_shape=jax.ShapeDtypeStruct((rows, _LANES), orig_dtype),
        grid=grid,
        in_specs=[pl.BlockSpec((1, 1), lambda i: (0, 0)),                 # noise_std
                  pl.BlockSpec((block_rows, _LANES), lambda i: (i, 0)),   # audio
                  pl.BlockSpec((block_rows, _LANES), lambda i: (i, 0))],  # random bits
        out_specs=pl.BlockSpec((block_rows, _LANES), lambda i: (i, 0)),
        compiler_params=pltpu.CompilerParams(
            dimension_semantics=("parallel",)),    # independent tiles -> megacore
    )(nstd, x2d, bits)

    out = out2d.reshape(-1)[:n].reshape(orig_shape)
    if return_std:
        return out, std
    return out


if __name__ == "__main__":
    root = jax.random.PRNGKey(0)
    k_audio, k_noise = jax.random.split(root)
    audio = jax.random.normal(k_audio, (4, 2048), jnp.float32)   # (batch, time)

    out, std_k = gaussian_noise(audio, key=k_noise, return_std=True)
    out = jax.block_until_ready(out)

    assert out.shape == audio.shape and out.dtype == audio.dtype

    # the Pallas global-std reduction must match torch.std semantics (ddof=1)
    std_ref = float(jnp.std(audio, ddof=1))
    assert abs(float(std_k) - std_ref) < 2e-3 * std_ref + 1e-6

    # added noise must be tiny relative to the signal (snr drawn from [1e-4, 1e-2])
    added = out - audio
    ratio = float(jnp.std(added)) / std_ref
    assert MIN_SNR * 0.5 < ratio < MAX_SNR * 2.0, ratio

    print("KERNEL_OK")
</pallas_src>

<mosaic_0001>
module attributes {stable_mosaic.version = 11 : i64} {
  func.func @_stats_kernel(%arg0: i32, %arg1: memref<8x1024xf32, #tpu.memory_space<vmem>>, %arg2: memref<8x1024xf32, #tpu.memory_space<vmem>>, %arg3: memref<8x1024xf32, #tpu.memory_space<vmem>>) attributes {dimension_semantics = [#tpu.dimension_semantics<arbitrary>], iteration_bounds = array<i64: 1>, scalar_prefetch = 0 : i64, scratch_operands = 0 : i64, tpu.core_type = #tpu.core_type<tc>, window_params = [{transform_indices = @transform_0, window_bounds = array<i64: 8, 1024>}, {pipeline_mode = #tpu.pipeline_mode<synchronous>, transform_indices = @transform_1, window_bounds = array<i64: 8, 1024>}, {pipeline_mode = #tpu.pipeline_mode<synchronous>, transform_indices = @transform_2, window_bounds = array<i64: 8, 1024>}]} {
    %c0_i32 = arith.constant 0 : i32
    %0 = arith.cmpi eq, %arg0, %c0_i32 : i32
    %1 = arith.extui %0 : i1 to i32
    %c0_i32_0 = arith.constant 0 : i32
    %2 = arith.cmpi ne, %1, %c0_i32_0 : i32
    scf.if %2 {
      %cst_11 = arith.constant 0.000000e+00 : f32
      %14 = vector.broadcast %cst_11 : f32 to vector<8x1024xf32>
      %c0_12 = arith.constant 0 : index
      %c0_13 = arith.constant 0 : index
      %15 = vector.load %arg2[%c0_12, %c0_13] : memref<8x1024xf32, #tpu.memory_space<vmem>>, vector<8x1024xf32>
      tpu.vector_store %arg2[%c0_12, %c0_13], %14 {strides = array<i32>} : memref<8x1024xf32, #tpu.memory_space<vmem>>, vector<8x1024xf32>,
      %cst_14 = arith.constant 0.000000e+00 : f32
      %16 = vector.broadcast %cst_14 : f32 to vector<8x1024xf32>
      %c0_15 = arith.constant 0 : index
      %c0_16 = arith.constant 0 : index
      %17 = vector.load %arg3[%c0_15, %c0_16] : memref<8x1024xf32, #tpu.memory_space<vmem>>, vector<8x1024xf32>
      tpu.vector_store %arg3[%c0_15, %c0_16], %16 {strides = array<i32>} : memref<8x1024xf32, #tpu.memory_space<vmem>>, vector<8x1024xf32>,
    } else {
    }
    %c0 = arith.constant 0 : index
    %c0_1 = arith.constant 0 : index
    %3 = vector.load %arg1[%c0, %c0_1] : memref<8x1024xf32, #tpu.memory_space<vmem>>, vector<8x1024xf32>
    %4 = vector.shape_cast %3 : vector<8x1024xf32> to vector<1x8x1024xf32>
    %c0_2 = arith.constant 0 : index
    %c0_3 = arith.constant 0 : index
    %5 = vector.load %arg2[%c0_2, %c0_3] : memref<8x1024xf32, #tpu.memory_space<vmem>>, vector<8x1024xf32>
    %cst = arith.constant dense<0.000000e+00> : vector<8x1024xf32>
    %6 = vector.multi_reduction <add>, %4, %cst [0] : vector<1x8x1024xf32> to vector<8x1024xf32>
    %7 = arith.addf %5, %6 : vector<8x1024xf32>
    %c0_4 = arith.constant 0 : index
    %c0_5 = arith.constant 0 : index
    %8 = vector.load %arg2[%c0_4, %c0_5] : memref<8x1024xf32, #tpu.memory_space<vmem>>, vector<8x1024xf32>
    tpu.vector_store %arg2[%c0_4, %c0_5], %7 {strides = array<i32>} : memref<8x1024xf32, #tpu.memory_space<vmem>>, vector<8x1024xf32>,
    %c0_6 = arith.constant 0 : index
    %c0_7 = arith.constant 0 : index
    %9 = vector.load %arg3[%c0_6, %c0_7] : memref<8x1024xf32, #tpu.memory_space<vmem>>, vector<8x1024xf32>
    %10 = arith.mulf %4, %4 : vector<1x8x1024xf32>
    %cst_8 = arith.constant dense<0.000000e+00> : vector<8x1024xf32>
    %11 = vector.multi_reduction <add>, %10, %cst_8 [0] : vector<1x8x1024xf32> to vector<8x1024xf32>
    %12 = arith.addf %9, %11 : vector<8x1024xf32>
    %c0_9 = arith.constant 0 : index
    %c0_10 = arith.constant 0 : index
    %13 = vector.load %arg3[%c0_9, %c0_10] : memref<8x1024xf32, #tpu.memory_space<vmem>>, vector<8x1024xf32>
    tpu.vector_store %arg3[%c0_9, %c0_10], %12 {strides = array<i32>} : memref<8x1024xf32, #tpu.memory_space<vmem>>, vector<8x1024xf32>,
    return
  }
  func.func @transform_0(%arg0: i32) -> (i32, i32) {
    %c0_i32 = arith.constant 0 : i32
    %c0_i32_0 = arith.constant 0 : i32
    return %arg0, %c0_i32 : i32, i32
  }
  func.func @transform_1(%arg0: i32) -> (i32, i32) {
    %c0_i32 = arith.constant 0 : i32
    %c0_i32_0 = arith.constant 0 : i32
    %c0_i32_1 = arith.constant 0 : i32
    return %c0_i32, %c0_i32_0 : i32, i32
  }
  func.func @transform_2(%arg0: i32) -> (i32, i32) {
    %c0_i32 = arith.constant 0 : i32
    %c0_i32_0 = arith.constant 0 : i32
    %c0_i32_1 = arith.constant 0 : i32
    return %c0_i32, %c0_i32_0 : i32, i32
  }
}

</mosaic_0001>

<llo_original>
// kernel: tpu_custom_call.1
$region0: #{tpu_custom_call.1}
  #allocation0 [shape = 'u32[]', space=smem, size = 0x4, offset = 0x4, fixed_abs, tag = 'smem constant byte address 0x4 - core index']
  #allocation1 [shape = 'u32[144,128]{1,0:T(1,128)}', space=vmem, size = 0x12000, scoped, tag = 'internal scratch']
  %s0 = inlined_call_operand.hbm [shape: f32[8,1024], index: 0, kind: input, shape index: {}]
  %s1 = inlined_call_operand.hbm [shape: f32[8,1024], index: 1, kind: output, shape index: {0}]
  %s2 = inlined_call_operand.hbm [shape: f32[8,1024], index: 2, kind: output, shape index: {1}]
  %3 = xla_tuple %s1, %s2
  %s4 = sld [smem:[#allocation0]]
  $region30: #{tpu_custom_call.1} parent=0
    _
  %s6 = ssub.s32 1, %s4
  %s7 = scalar_select 0, %s6, %s4
  $region1: #{tpu_custom_call.1} parent=0
    #allocation2 [shape = 'u8[32768]{0}', space=vmem, size = 0x8000, scoped, tag = 'input window, operand 0, single buffered']
    #allocation3 [shape = 's32[1]{0}', space=sflag, size = 0x4, scoped, tag = 'scoped memory for tpu_custom_call.1']
    #allocation4 [shape = 's32[1]{0}', space=sflag, size = 0x4, scoped, tag = 'scoped memory for tpu_custom_call.1']
    #allocation5 [shape = 'u8[32768]{0}', space=vmem, size = 0x8000, scoped, tag = 'output window, operand 0, single buffered']
    #allocation6 [shape = 'u8[32768]{0}', space=vmem, size = 0x8000, scoped, tag = 'output window, operand 1, single buffered']
    #allocation7 [shape = 's32[1]{0}', space=sflag, size = 0x4, scoped, tag = 'scoped memory for tpu_custom_call.1']
    %8 = vsyncpa [#allocation3], 0
    %9 = vsyncpa [#allocation4], 0
    %10 = vsyncpa [#allocation7], 0
    // Predicated region
    $region2: #{tpu_custom_call.1} parent=1 // pred_check
      _
    $region3: #{tpu_custom_call.1} parent=1 // pred_check_branch
      %12 = sbr.rel (0) target = $region5
    $region4: #{tpu_custom_call.1} parent=1 // pred_region
      %s14 = ssub.s32 1024, 1024
      %15 = vsyncadd [#allocation3], %s14
      %s17 = sshll.u32 [#allocation2], 4
      %s18 = int_to_ptr.vmem [resolvable:$true] %s17
      %20 = dma.hbm_to_vmem [thread:$0]  %s0, 1024, %s18, [#allocation3]
    $region5: #{tpu_custom_call.1} parent=1 // pred_fallthru
      _
    // Predicated region
    $region6: #{tpu_custom_call.1} parent=1 // pred_check
      _
    $region7: #{tpu_custom_call.1} parent=1 // pred_check_branch
      %22 = sbr.rel (0) target = $region9
    $region8: #{tpu_custom_call.1} parent=1 // pred_region
      %23 = dma.done [#allocation3], 1024
    $region9: #{tpu_custom_call.1} parent=1 // pred_fallthru
      _
    %p24 = scmp.eq.s32.totalorder 0, 0
    // Predicated region
    $region10: #{tpu_custom_call.1} parent=1 // pred_check
      %p25 = pneg %p24
    $region11: #{tpu_custom_call.1} parent=1 // pred_check_branch
      %27 = sbr.rel (%p25) target = $region13
    $region12: #{tpu_custom_call.1} parent=1 // pred_region
      %28 = vst [vmem:[#allocation5] sm:$0xff] 0.0
      %29 = vst [vmem:[#allocation5 + $0x8] sm:$0xff] 0.0
      %30 = vst [vmem:[#allocation5 + $0x10] sm:$0xff] 0.0
      %31 = vst [vmem:[#allocation5 + $0x18] sm:$0xff] 0.0
      %32 = vst [vmem:[#allocation5 + $0x20] sm:$0xff] 0.0
      %33 = vst [vmem:[#allocation5 + $0x28] sm:$0xff] 0.0
      %34 = vst [vmem:[#allocation5 + $0x30] sm:$0xff] 0.0
      %35 = vst [vmem:[#allocation5 + $0x38] sm:$0xff] 0.0
      %36 = vst [vmem:[#allocation6] sm:$0xff] 0.0
      %37 = vst [vmem:[#allocation6 + $0x8] sm:$0xff] 0.0
      %38 = vst [vmem:[#allocation6 + $0x10] sm:$0xff] 0.0
      %39 = vst [vmem:[#allocation6 + $0x18] sm:$0xff] 0.0
      %40 = vst [vmem:[#allocation6 + $0x20] sm:$0xff] 0.0
      %41 = vst [vmem:[#allocation6 + $0x28] sm:$0xff] 0.0
      %42 = vst [vmem:[#allocation6 + $0x30] sm:$0xff] 0.0
      %43 = vst [vmem:[#allocation6 + $0x38] sm:$0xff] 0.0
    $region13: #{tpu_custom_call.1} parent=1 // pred_fallthru
      _
    %v44 = vld [vmem:[#allocation2] sm:$0xff]
    %v45 = vld [vmem:[#allocation2 + $0x8] sm:$0xff]
    %v46 = vld [vmem:[#allocation2 + $0x10] sm:$0xff]
    %v47 = vld [vmem:[#allocation2 + $0x18] sm:$0xff]
    %v48 = vld [vmem:[#allocation2 + $0x20] sm:$0xff]
    %v49 = vld [vmem:[#allocation2 + $0x28] sm:$0xff]
    %v50 = vld [vmem:[#allocation2 + $0x30] sm:$0xff]
    %v51 = vld [vmem:[#allocation2 + $0x38] sm:$0xff]
    %v52 = vld [vmem:[#allocation5] sm:$0xff]
    %v53 = vld [vmem:[#allocation5 + $0x8] sm:$0xff]
    %v54 = vld [vmem:[#allocation5 + $0x10] sm:$0xff]
    %v55 = vld [vmem:[#allocation5 + $0x18] sm:$0xff]
    %v56 = vld [vmem:[#allocation5 + $0x20] sm:$0xff]
    %v57 = vld [vmem:[#allocation5 + $0x28] sm:$0xff]
    %v58 = vld [vmem:[#allocation5 + $0x30] sm:$0xff]
    %v59 = vld [vmem:[#allocation5 + $0x38] sm:$0xff]
    %v60 = vadd.f32 %v44, 0.0
    %v61 = vadd.f32 %v45, 0.0
    %v62 = vadd.f32 %v46, 0.0
    %v63 = vadd.f32 %v47, 0.0
    %v64 = vadd.f32 %v48, 0.0
    %v65 = vadd.f32 %v49, 0.0
    %v66 = vadd.f32 %v50, 0.0
    %v67 = vadd.f32 %v51, 0.0
    %v68 = vadd.f32 %v52, %v60
    %v69 = vadd.f32 %v53, %v61
    %v70 = vadd.f32 %v54, %v62
    %v71 = vadd.f32 %v55, %v63
    %v72 = vadd.f32 %v56, %v64
    %v73 = vadd.f32 %v57, %v65
    %v74 = vadd.f32 %v58, %v66
    %v75 = vadd.f32 %v59, %v67
    %76 = vst [vmem:[#allocation5] sm:$0xff] %v68
    %77 = vst [vmem:[#allocation5 + $0x8] sm:$0xff] %v69
    %78 = vst [vmem:[#allocation5 + $0x10] sm:$0xff] %v70
    %79 = vst [vmem:[#allocation5 + $0x18] sm:$0xff] %v71
    %80 = vst [vmem:[#allocation5 + $0x20] sm:$0xff] %v72
    %81 = vst [vmem:[#allocation5 + $0x28] sm:$0xff] %v73
    %82 = vst [vmem:[#allocation5 + $0x30] sm:$0xff] %v74
    %83 = vst [vmem:[#allocation5 + $0x38] sm:$0xff] %v75
    %v84 = vld [vmem:[#allocation6] sm:$0xff]
    %v85 = vld [vmem:[#allocation6 + $0x8] sm:$0xff]
    %v86 = vld [vmem:[#allocation6 + $0x10] sm:$0xff]
    %v87 = vld [vmem:[#allocation6 + $0x18] sm:$0xff]
    %v88 = vld [vmem:[#allocation6 + $0x20] sm:$0xff]
    %v89 = vld [vmem:[#allocation6 + $0x28] sm:$0xff]
    %v90 = vld [vmem:[#allocation6 + $0x30] sm:$0xff]
    %v91 = vld [vmem:[#allocation6 + $0x38] sm:$0xff]
    %v92 = vmul.f32 %v44, %v44
    %v93 = vmul.f32 %v45, %v45
    %v94 = vmul.f32 %v46, %v46
    %v95 = vmul.f32 %v47, %v47
    %v96 = vmul.f32 %v48, %v48
    %v97 = vmul.f32 %v49, %v49
    %v98 = vmul.f32 %v50, %v50
    %v99 = vmul.f32 %v51, %v51
    %v100 = vadd.f32 %v92, 0.0
    %v101 = vadd.f32 %v93, 0.0
    %v102 = vadd.f32 %v94, 0.0
    %v103 = vadd.f32 %v95, 0.0
    %v104 = vadd.f32 %v96, 0.0
    %v105 = vadd.f32 %v97, 0.0
    %v106 = vadd.f32 %v98, 0.0
    %v107 = vadd.f32 %v99, 0.0
    %v108 = vadd.f32 %v84, %v100
    %v109 = vadd.f32 %v85, %v101
    %v110 = vadd.f32 %v86, %v102
    %v111 = vadd.f32 %v87, %v103
    %v112 = vadd.f32 %v88, %v104
    %v113 = vadd.f32 %v89, %v105
    %v114 = vadd.f32 %v90, %v106
    %v115 = vadd.f32 %v91, %v107
    %116 = vst [vmem:[#allocation6] sm:$0xff] %v108
    %117 = vst [vmem:[#allocation6 + $0x8] sm:$0xff] %v109
    %118 = vst [vmem:[#allocation6 + $0x10] sm:$0xff] %v110
    %119 = vst [vmem:[#allocation6 + $0x18] sm:$0xff] %v111
    %120 = vst [vmem:[#allocation6 + $0x20] sm:$0xff] %v112
    %121 = vst [vmem:[#allocation6 + $0x28] sm:$0xff] %v113
    %122 = vst [vmem:[#allocation6 + $0x30] sm:$0xff] %v114
    %123 = vst [vmem:[#allocation6 + $0x38] sm:$0xff] %v115
    // Predicated region
    $region14: #{tpu_custom_call.1} parent=1 // pred_check
      _
    $region15: #{tpu_custom_call.1} parent=1 // pred_check_branch
      %125 = sbr.rel (0) target = $region17
    $region16: #{tpu_custom_call.1} parent=1 // pred_region
      %s127 = ssub.s32 1024, 1024
      %128 = vsyncadd [#allocation4], %s127
      %s130 = sshll.u32 [#allocation5], 4
      %s131 = int_to_ptr.vmem [resolvable:$true] %s130
      %133 = dma.vmem_to_hbm [thread:$0]  %s131, 1024, %s1, [#allocation4]
    $region17: #{tpu_custom_call.1} parent=1 // pred_fallthru
      _
    // Predicated region
    $region18: #{tpu_custom_call.1} parent=1 // pred_check
      _
    $region19: #{tpu_custom_call.1} parent=1 // pred_check_branch
      %135 = sbr.rel (0) target = $region21
    $region20: #{tpu_custom_call.1} parent=1 // pred_region
      %s137 = ssub.s32 1024, 1024
      %138 = vsyncadd [#allocation7], %s137
      %s140 = sshll.u32 [#allocation6], 4
      %s141 = int_to_ptr.vmem [resolvable:$true] %s140
      %143 = dma.vmem_to_hbm [thread:$0]  %s141, 1024, %s2, [#allocation7]
    $region21: #{tpu_custom_call.1} parent=1 // pred_fallthru
      _
    // Predicated region
    $region22: #{tpu_custom_call.1} parent=1 // pred_check
      _
    $region23: #{tpu_custom_call.1} parent=1 // pred_check_branch
      %145 = sbr.rel (0) target = $region25
    $region24: #{tpu_custom_call.1} parent=1 // pred_region
      %146 = dma.done [#allocation4], 1024
    $region25: #{tpu_custom_call.1} parent=1 // pred_fallthru
      _
    // Predicated region
    $region26: #{tpu_custom_call.1} parent=1 // pred_check
      _
    $region27: #{tpu_custom_call.1} parent=1 // pred_check_branch
      %148 = sbr.rel (0) target = $region29
    $region28: #{tpu_custom_call.1} parent=1 // pred_region
      %149 = dma.done [#allocation7], 1024
    $region29: #{tpu_custom_call.1} parent=1 // pred_fallthru
      _
    %150 = vsyncpa [#allocation3], 1
    %151 = vsyncpa [#allocation4], 1
    %152 = vsyncpa [#allocation7], 1

</llo_original>
